<compile_context>
chip_gen: v5e
topology: v5e:2x2
jax: 0.10.0
libtpu: 0.0.40
codegen_flags: <defaults>
</compile_context>

<pallas_src>
import functools

import numpy as np
import jax
import jax.numpy as jnp
from jax import lax
from jax.experimental import pallas as pl
from jax.experimental.pallas import tpu as pltpu


def cam_kernel(gamma_ref, x_ref, o_ref, *, mxu_dtype, defer_norm):
    """One grid step: a (Bt, C, Npad) batch tile, fully resident in VMEM."""
    # Build the MXU operand directly from the ref so no extra f32 slab of x
    # stays live across the matmuls (x is re-read from VMEM in the epilogue).
    xm = x_ref[...].astype(mxu_dtype)                        # (Bt, C, N)

    # energy[b] = X_b @ X_b^T : contract the lane (spatial) axis of both
    # operands, batched over the block batch dim -> no transpose materialized.
    energy = lax.dot_general(
        xm, xm,
        dimension_numbers=(((2,), (2,)), ((0,), (0,))),
        preferred_element_type=jnp.float32)                  # (Bt, C, C) f32

    # softmax(rowmax(E) - E) stabilizes to exp(rowmin(E) - E) / rowsum:
    # rowmax(rowmax(E) - E) = rowmax(E) - rowmin(E), so the stabilized
    # exponent collapses to rowmin(E) - E.  One cross-lane reduce total.
    e_min = jnp.min(energy, axis=-1, keepdims=True)          # (Bt, C, 1)
    p = jnp.exp(e_min - energy)                              # (Bt, C, C), <= 1
    denom = jnp.sum(p, axis=-1, keepdims=True)               # (Bt, C, 1)

    # EUP approx reciprocal on the bf16 fast path (error << bf16 operand
    # quantization); exact divide when the caller asked for f32 operands.
    approx = (np.dtype(mxu_dtype) != np.dtype(jnp.float32))
    inv = pl.reciprocal(denom, approx=approx)                # (Bt, C, 1)

    gamma = gamma_ref[0]
    if defer_norm:
        # C > N: feed unnormalized p to the MXU and fold the per-row 1/denom
        # into the epilogue FMA (C*N multiplies instead of C*C + extra cast).
        out = lax.dot_general(
            p.astype(mxu_dtype), xm,
            dimension_numbers=(((2,), (1,)), ((0,), (0,))),
            preferred_element_type=jnp.float32)              # (Bt, C, N) f32
        o_ref[...] = (gamma * (out * inv) + x_ref[...]).astype(o_ref.dtype)
    else:
        attention = p * inv                                  # (Bt, C, C)
        out = lax.dot_general(
            attention.astype(mxu_dtype), xm,
            dimension_numbers=(((2,), (1,)), ((0,), (0,))),
            preferred_element_type=jnp.float32)              # (Bt, C, N) f32
        o_ref[...] = (gamma * out + x_ref[...]).astype(o_ref.dtype)


def _tpu_vmem_capacity_bytes():
    """Per-TensorCore VMEM capacity; conservative 128 MiB fallback (v5e/v6e)."""
    try:
        return int(pltpu.get_tpu_info().vmem_capacity_bytes)
    except Exception:
        return 128 * 1024 * 1024


def cam_module_forward(x, gamma, *, block_b=None, mxu_dtype=jnp.bfloat16,
                       vmem_limit_bytes=None):
    """CAM_Module.forward.

    x:     (B, C, H, W)
    gamma: (1,)  (the nn.Parameter(torch.zeros(1)))
    mxu_dtype: dtype fed to the MXU (accumulation is always f32).  bf16 is the
               MXU-native fast path; pass jnp.float32 for exact numerics.
    """
    B, C, H, W = x.shape
    N = H * W
    mxu_dtype = np.dtype(mxu_dtype)

    # Lane-dense spatial axis: pad N once in HBM to a multiple of 128 so every
    # output store inside the kernel is a full-lane (unmasked) vst.  Zero
    # padding is exactly neutral for X @ X^T, attention @ X and the residual.
    Npad = ((N + 127) // 128) * 128
    x_flat = x.reshape(B, C, N)
    if Npad != N:
        x_flat = jnp.pad(x_flat, ((0, 0), (0, 0), (0, Npad - N)))

    itemsize = x.dtype.itemsize
    mxu_itemsize = mxu_dtype.itemsize

    # --- honest per-batch-element VMEM footprint ----------------------------
    # input + output tiles, each double-buffered by the auto-pipeline:
    io_bytes = 2 * 2 * C * Npad * itemsize
    # in-kernel intermediates: MXU-dtype copy of x, f32 energy + p, the cast
    # operand of the second matmul, and the f32 out accumulator:
    interm_bytes = (C * Npad * mxu_itemsize
                    + 2 * C * C * 4
                    + C * C * mxu_itemsize
                    + C * Npad * 4)
    per_batch = io_bytes + interm_bytes

    # --- generation-aware VMEM budget ----------------------------------------
    vmem_cap = _tpu_vmem_capacity_bytes()      # 128 MiB v5e/v6e, 64 MiB v7x TC
    budget = (vmem_cap * 3) // 4               # ~96 MiB / ~48 MiB with headroom
    num_cores = 2 if vmem_cap <= 64 * 1024 * 1024 else 1   # v7x: 2 TCs/chip

    if block_b is None:
        block_b = max(1, min(B, budget // max(1, per_batch)))
        # Keep a handful of grid steps when B allows (>= 2 per TC on v7x,
        # >= 4 total elsewhere) so the pipeline can hide DMA latency; on
        # single-TC chips this only bites when B is small anyway.
        target_steps = min(B, max(4, 2 * num_cores))
        if target_steps > 1:
            block_b = min(block_b, max(1, B // target_steps))
        while B % block_b:                     # grid must tile B exactly
            block_b -= 1

    if vmem_limit_bytes is None:
        # Always pass an explicit scoped-VMEM limit (defaults are 16/32 MiB).
        vmem_limit_bytes = int(min(vmem_cap - (8 << 20),
                                   max(budget,
                                       block_b * per_batch + (4 << 20))))

    grid = (B // block_b,)
    kernel = functools.partial(cam_kernel, mxu_dtype=mxu_dtype,
                               defer_norm=(C > Npad))

    out_flat = pl.pallas_call(
        kernel,
        out_shape=jax.ShapeDtypeStruct((B, C, Npad), x.dtype),
        grid=grid,
        in_specs=[
            pl.BlockSpec(memory_space=pltpu.MemorySpace.SMEM),    # gamma (1,)
            pl.BlockSpec((block_b, C, Npad), lambda b: (b, 0, 0)),  # x batch tile
        ],
        out_specs=pl.BlockSpec((block_b, C, Npad), lambda b: (b, 0, 0)),
        compiler_params=pltpu.CompilerParams(
            dimension_semantics=("parallel",),
            vmem_limit_bytes=vmem_limit_bytes),
    )(gamma, x_flat)

    out = out_flat[:, :, :N] if Npad != N else out_flat
    return out.reshape(B, C, H, W)


def cam_module_reference(x, gamma, mxu_dtype=None):
    """Pure-JAX reference matching the PyTorch forward.  If mxu_dtype is given,
    the matmul operands are cast the same way the kernel's fast path does."""
    B, C, H, W = x.shape
    xf = x.reshape(B, C, H * W)
    xm = xf if mxu_dtype is None else xf.astype(mxu_dtype)
    energy = jnp.einsum("bcn,bdn->bcd", xm, xm,
                        preferred_element_type=jnp.float32)
    energy_new = jnp.max(energy, axis=-1, keepdims=True) - energy
    attention = jax.nn.softmax(energy_new, axis=-1)
    if mxu_dtype is not None:
        attention = attention.astype(mxu_dtype)
    out = jnp.einsum("bcd,bdn->bcn", attention, xm,
                     preferred_element_type=jnp.float32)
    out = out.reshape(B, C, H, W).astype(x.dtype)
    return gamma[0] * out + x


if __name__ == "__main__":
    key = jax.random.PRNGKey(0)

    # (1) Primary small shape: B=4 -> 4-step "parallel" batch grid.
    B, C, H, W = 4, 8, 16, 16
    x = jax.random.normal(key, (B, C, H, W), dtype=jnp.float32)
    # nn.Parameter(torch.zeros(1)) -> shape (1,); non-zero so the attention
    # path actually contributes to the checked output.
    gamma = jnp.array([0.5], dtype=jnp.float32)

    out = jax.block_until_ready(cam_module_forward(x, gamma))
    assert out.shape == (B, C, H, W)

    out_f32 = jax.block_until_ready(
        cam_module_forward(x, gamma, mxu_dtype=jnp.float32))
    ref_f32 = cam_module_reference(x, gamma)
    err_f32 = float(jnp.max(jnp.abs(out_f32 - ref_f32)))
    assert err_f32 < 1e-3, f"f32 path mismatch vs reference: {err_f32}"

    ref_bf16 = cam_module_reference(x, gamma, mxu_dtype=jnp.bfloat16)
    err_bf16 = float(jnp.max(jnp.abs(out - ref_bf16)))
    assert err_bf16 < 5e-2, f"bf16 path mismatch vs cast reference: {err_bf16}"

    # (2) Non-128-aligned spatial (H*W=100): exercises the lane-padding path.
    x2 = jax.random.normal(jax.random.PRNGKey(1), (2, 8, 10, 10),
                           dtype=jnp.float32)
    out2 = jax.block_until_ready(
        cam_module_forward(x2, gamma, mxu_dtype=jnp.float32))
    ref2 = cam_module_reference(x2, gamma)
    err2 = float(jnp.max(jnp.abs(out2 - ref2)))
    assert err2 < 1e-3, f"padded-N path mismatch vs reference: {err2}"

    # (3) C > Npad: exercises the deferred-normalization epilogue.
    x3 = jax.random.normal(jax.random.PRNGKey(2), (2, 256, 8, 8),
                           dtype=jnp.float32)
    out3 = jax.block_until_ready(
        cam_module_forward(x3, gamma, mxu_dtype=jnp.float32))
    ref3 = cam_module_reference(x3, gamma)
    err3 = float(jnp.max(jnp.abs(out3 - ref3)))
    assert err3 < 2e-3, f"defer-norm path mismatch vs reference: {err3}"

    print("KERNEL_OK")
</pallas_src>

<mosaic_0001>
module attributes {stable_mosaic.version = 11 : i64} {
  func.func @cam_kernel(%arg0: i32, %arg1: memref<1xf32, #tpu.memory_space<smem>>, %arg2: memref<1x8x256xf32, #tpu.memory_space<vmem>>, %arg3: memref<1x8x256xf32, #tpu.memory_space<vmem>>) attributes {dimension_semantics = [#tpu.dimension_semantics<parallel>], iteration_bounds = array<i64: 4>, scalar_prefetch = 0 : i64, scratch_operands = 0 : i64, tpu.core_type = #tpu.core_type<tc>, window_params = [{transform_indices = @transform_0, window_bounds = array<i64: 1>}, {transform_indices = @transform_1, window_bounds = array<i64: 1, 8, 256>}, {transform_indices = @transform_2, window_bounds = array<i64: 1, 8, 256>}]} {
    %c0 = arith.constant 0 : index
    %c0_0 = arith.constant 0 : index
    %c0_1 = arith.constant 0 : index
    %0 = vector.load %arg2[%c0, %c0_0, %c0_1] : memref<1x8x256xf32, #tpu.memory_space<vmem>>, vector<1x8x256xf32>
    %1 = arith.truncf %0 : vector<1x8x256xf32> to vector<1x8x256xbf16>
    %cst = arith.constant dense<0.000000e+00> : vector<1x8x8xf32>
    %2 = tpu.matmul %1, %1, %cst {dimension_numbers = #tpu.dot_dimension_numbers<[2], [2], [1], [1], [0, 0, 0, 1, 1, 1], [0], [0]>} : vector<1x8x256xbf16>, vector<1x8x256xbf16>, vector<1x8x8xf32> -> vector<1x8x8xf32>
    %cst_2 = arith.constant dense<0x7F800000> : vector<1x8xf32>
    %3 = vector.multi_reduction <minimumf>, %2, %cst_2 [2] : vector<1x8x8xf32> to vector<1x8xf32>
    %4 = vector.shape_cast %3 : vector<1x8xf32> to vector<1x8x1xf32>
    %5 = vector.broadcast %4 : vector<1x8x1xf32> to vector<1x8x8xf32>
    %6 = arith.subf %5, %2 : vector<1x8x8xf32>
    %7 = math.exp %6 : vector<1x8x8xf32>
    %cst_3 = arith.constant dense<0.000000e+00> : vector<1x8xf32>
    %8 = vector.multi_reduction <add>, %7, %cst_3 [2] : vector<1x8x8xf32> to vector<1x8xf32>
    %9 = vector.shape_cast %8 : vector<1x8xf32> to vector<1x8x1xf32>
    %10 = tpu.reciprocal %9 {approx = true} : vector<1x8x1xf32> -> vector<1x8x1xf32>
    %c0_4 = arith.constant 0 : index
    %11 = memref.load %arg1[%c0_4] : memref<1xf32, #tpu.memory_space<smem>>
    %12 = vector.broadcast %10 : vector<1x8x1xf32> to vector<1x8x8xf32>
    %13 = arith.mulf %7, %12 : vector<1x8x8xf32>
    %14 = arith.truncf %13 : vector<1x8x8xf32> to vector<1x8x8xbf16>
    %cst_5 = arith.constant dense<0.000000e+00> : vector<1x8x256xf32>
    %15 = tpu.matmul %14, %1, %cst_5 {dimension_numbers = #tpu.dot_dimension_numbers<[2], [1], [1], [2], [0, 0, 0, 1, 1, 2], [0], [0]>} : vector<1x8x8xbf16>, vector<1x8x256xbf16>, vector<1x8x256xf32> -> vector<1x8x256xf32>
    %16 = vector.broadcast %11 : f32 to vector<1x8x256xf32>
    %17 = arith.mulf %16, %15 : vector<1x8x256xf32>
    %c0_6 = arith.constant 0 : index
    %c0_7 = arith.constant 0 : index
    %c0_8 = arith.constant 0 : index
    %18 = vector.load %arg2[%c0_6, %c0_7, %c0_8] : memref<1x8x256xf32, #tpu.memory_space<vmem>>, vector<1x8x256xf32>
    %19 = arith.addf %17, %18 : vector<1x8x256xf32>
    %c0_9 = arith.constant 0 : index
    %c0_10 = arith.constant 0 : index
    %c0_11 = arith.constant 0 : index
    %20 = vector.load %arg3[%c0_9, %c0_10, %c0_11] : memref<1x8x256xf32, #tpu.memory_space<vmem>>, vector<1x8x256xf32>
    tpu.vector_store %arg3[%c0_9, %c0_10, %c0_11], %19 {strides = array<i32>} : memref<1x8x256xf32, #tpu.memory_space<vmem>>, vector<1x8x256xf32>,
    return
  }
  func.func @transform_0(%arg0: i32) -> i32 {
    %c0_i32 = arith.constant 0 : i32
    %c0_i32_0 = arith.constant 0 : i32
    return %c0_i32 : i32
  }
  func.func @transform_1(%arg0: i32) -> (i32, i32, i32) {
    %c0_i32 = arith.constant 0 : i32
    %c0_i32_0 = arith.constant 0 : i32
    %c0_i32_1 = arith.constant 0 : i32
    return %arg0, %c0_i32, %c0_i32_0 : i32, i32, i32
  }
  func.func @transform_2(%arg0: i32) -> (i32, i32, i32) {
    %c0_i32 = arith.constant 0 : i32
    %c0_i32_0 = arith.constant 0 : i32
    %c0_i32_1 = arith.constant 0 : i32
    return %arg0, %c0_i32, %c0_i32_0 : i32, i32, i32
  }
}

</mosaic_0001>

<llo_original>
// kernel: tpu_custom_call.1
$region0: #{tpu_custom_call.1}
  #allocation0 [shape = 'u32[]', space=smem, size = 0x4, offset = 0x4, fixed_abs, tag = 'smem constant byte address 0x4 - core index']
  #allocation1 [shape = 'u32[72,128]{1,0:T(1,128)}', space=vmem, size = 0x9000, scoped, tag = 'internal scratch']
  #allocation2 [shape = 'f32[1]{0:T(128)S(6)}', space=smem, size = 0x200, scoped, tag = 'scoped memory for tpu_custom_call.1']
  %s0 = inlined_call_operand.<no memory space> [shape: f32[1], index: 0, kind: input, shape index: {}]
  %s1 = inlined_call_operand.hbm [shape: f32[4,8,256], index: 1, kind: input, shape index: {}]
  %s2 = inlined_call_operand.hbm [shape: f32[4,8,256], index: 2, kind: output, shape index: {}]
  %s3 = sld [smem:[#allocation0]]
  $region45: #{tpu_custom_call.1} parent=0
    _
  %s5 = ssub.s32 1, %s3
  %s6 = scalar_select 0, %s5, %s3
  %7 = sst [smem:[#allocation2]] %s0
  $region1: #{tpu_custom_call.1} parent=0
    #allocation3 [shape = 'u8[16384]{0}', space=vmem, size = 0x4000, scoped, tag = 'input window, operand 1']
    #allocation4 [shape = 's32[2]{0}', space=sflag, size = 0x8, scoped, tag = 'scoped memory for tpu_custom_call.1']
    #allocation5 [shape = 's32[2]{0}', space=sflag, size = 0x8, scoped, tag = 'scoped memory for tpu_custom_call.1']
    #allocation6 [shape = 'u8[16384]{0}', space=vmem, size = 0x4000, scoped, tag = 'output window, operand 0']
    %8 = vsyncpa [#allocation4], 0
    %s9 = scalar_lea.sflag [#allocation4], 1
    %10 = vsyncpa %s9, 0
    %11 = vsyncpa [#allocation5], 0
    %s12 = scalar_lea.sflag [#allocation5], 1
    %13 = vsyncpa %s12, 0
    loop: start=0, step=1, limit=6
    $region2: #{tpu_custom_call.1} parent=1 // loop_pre_header
      _
    $region3: #{tpu_custom_call.1} parent=1 // loop_header
      %s15 = sphi 0, %s19
      %p16 = scmp.ge.s32.totalorder %s15, 6
      %s23 = sphi 0, %s23
      %s25 = sphi 0, %s23
      %s26 = sphi 0, %s25
      %s40 = sphi 0, %s26
      %s46 = sphi 0, %s48
      %s49 = sphi 0, %s46
      %s50 = sphi 0, %s49
      %s66 = sphi 0, %s50
      %s72 = sphi 0, %s74
      %s75 = sphi 0, %s72
      %s76 = sphi 0, %s75
      %s92 = sphi 0, %s76
    $region4: #{tpu_custom_call.1} parent=1 // loop_header_branch
      %18 = sbr.rel (%p16) target = $region8
    $region5: #{tpu_custom_call.1} parent=1 // loop_body
      %s20 = ssub.s32 %s15, 1
      %s21 = ssub.s32 %s15, 2
      %s22 = sadd.s32 %s15, 1
      %s24 = sadd.s32 %s23, 1
      %p27 = scmp.eq.s32.totalorder %s15, 3
      %p28 = scmp.ne.s32.totalorder %s23, %s25
      %p29 = scmp.eq.s32.totalorder %s15, 0
      %p30 = por %p28, %p29
      %p31 = scmp.ne.s32.totalorder %s23, %s25
      %p32 = scmp.eq.s32.totalorder %s20, 3
      %p33 = por %p31, %p32
      %p34 = scmp.ne.s32.totalorder %s25, %s26
      %p35 = scmp.eq.s32.totalorder %s20, 0
      %p36 = por %p34, %p35
      %p37 = scmp.ne.s32.totalorder %s25, %s26
      %p38 = scmp.eq.s32.totalorder %s21, 3
      %p39 = por %p37, %p38
      %p41 = scmp.ne.s32.totalorder %s26, %s40
      %p42 = scmp.eq.s32.totalorder %s21, 0
      %p43 = por %p41, %p42
      %s44 = ssub.s32 %s15, %s22
      %p45 = scmp.eq.s32.totalorder %s44, 0
      %s47 = sadd.s32 %s46, 1
      %s48 = scalar_select %p45, %s46, %s47
      %p51 = pneg %p45
      %p52 = scmp.eq.s32.totalorder %s15, 3
      %p53 = por %p51, %p52
      %p54 = scmp.ne.s32.totalorder %s46, %s49
      %p55 = scmp.eq.s32.totalorder %s15, 0
      %p56 = por %p54, %p55
      %p57 = scmp.ne.s32.totalorder %s46, %s49
      %p58 = scmp.eq.s32.totalorder %s20, 3
      %p59 = por %p57, %p58
      %p60 = scmp.ne.s32.totalorder %s49, %s50
      %p61 = scmp.eq.s32.totalorder %s20, 0
      %p62 = por %p60, %p61
      %p63 = scmp.ne.s32.totalorder %s49, %s50
      %p64 = scmp.eq.s32.totalorder %s21, 3
      %p65 = por %p63, %p64
      %p67 = scmp.ne.s32.totalorder %s50, %s66
      %p68 = scmp.eq.s32.totalorder %s21, 0
      %p69 = por %p67, %p68
      %s70 = ssub.s32 %s15, %s22
      %p71 = scmp.eq.s32.totalorder %s70, 0
      %s73 = sadd.s32 %s72, 1
      %s74 = scalar_select %p71, %s72, %s73
      %p77 = pneg %p71
      %p78 = scmp.eq.s32.totalorder %s15, 3
      %p79 = por %p77, %p78
      %p80 = scmp.ne.s32.totalorder %s72, %s75
      %p81 = scmp.eq.s32.totalorder %s15, 0
      %p82 = por %p80, %p81
      %p83 = scmp.ne.s32.totalorder %s72, %s75
      %p84 = scmp.eq.s32.totalorder %s20, 3
      %p85 = por %p83, %p84
      %p86 = scmp.ne.s32.totalorder %s75, %s76
      %p87 = scmp.eq.s32.totalorder %s20, 0
      %p88 = por %p86, %p87
      %p89 = scmp.ne.s32.totalorder %s75, %s76
      %p90 = scmp.eq.s32.totalorder %s21, 3
      %p91 = por %p89, %p90
      %p93 = scmp.ne.s32.totalorder %s76, %s92
      %p94 = scmp.eq.s32.totalorder %s21, 0
      %p95 = por %p93, %p94
      %p96 = scmp.le.s32.totalorder 1, %s15
      %p97 = scmp.lt.s32.totalorder %s15, 5
      %p98 = pnand %p96, %p97
      %p99 = pneg %p98
      // Predicated region
      $region9: #{tpu_custom_call.1} parent=5 // pred_check
        _
      $region10: #{tpu_custom_call.1} parent=5 // pred_check_branch
        %101 = sbr.rel (%p98) target = $region12
      $region11: #{tpu_custom_call.1} parent=5 // pred_region
        %s102 = ssub.s32 %s15, 1
        // Predicated region
        $region13: #{tpu_custom_call.1} parent=11 // pred_check
          %p103 = pneg %p36
        $region14: #{tpu_custom_call.1} parent=11 // pred_check_branch
          %105 = sbr.rel (%p103) target = $region16
        $region15: #{tpu_custom_call.1} parent=11 // pred_region
          _
        $region16: #{tpu_custom_call.1} parent=11 // pred_fallthru
          _
      $region12: #{tpu_custom_call.1} parent=5 // pred_fallthru
        _
      %p106 = scmp.lt.s32.totalorder %s15, 4
      // Predicated region
      $region17: #{tpu_custom_call.1} parent=5 // pred_check
        %p107 = pneg %p106
      $region18: #{tpu_custom_call.1} parent=5 // pred_check_branch
        %109 = sbr.rel (%p107) target = $region20
      $region19: #{tpu_custom_call.1} parent=5 // pred_region
        // Predicated region
        $region21: #{tpu_custom_call.1} parent=19 // pred_check
          %p110 = pneg %p56
        $region22: #{tpu_custom_call.1} parent=19 // pred_check_branch
          %112 = sbr.rel (%p110) target = $region24
        $region23: #{tpu_custom_call.1} parent=19 // pred_region
          %s113 = sand.u32 %s46, 1
          %s114 = scalar_lea.sflag [#allocation4], %s113
          %s115 = sand.u32 %s46, 1
          %s116 = smul.addr %s115, 16
          %s117 = scalar_lea.vmem [#allocation3], %s116
          %119 = vsyncadd %s114, 0
          %s120 = smul.addr %s15, 2
          %s121 = smul.addr %s120, 8
          %s122 = scalar_lea.hbm %s1, %s121
          %s124 = sshll.u32 %s122, 4
          %s125 = int_to_ptr.hbm [resolvable:$true] %s124
          %s126 = sshll.u32 %s117, 4
          %s127 = int_to_ptr.vmem [resolvable:$true] %s126
          %129 = dma.hbm_to_vmem [thread:$0]  %s125, 256, %s127, %s114
        $region24: #{tpu_custom_call.1} parent=19 // pred_fallthru
          _
      $region20: #{tpu_custom_call.1} parent=5 // pred_fallthru
        _
      %p130 = scmp.le.s32.totalorder 1, %s15
      %p131 = scmp.lt.s32.totalorder %s15, 5
      %p132 = pnand %p130, %p131
      %p133 = pneg %p132
      // Predicated region
      $region25: #{tpu_custom_call.1} parent=5 // pred_check
        _
      $region26: #{tpu_custom_call.1} parent=5 // pred_check_branch
        %135 = sbr.rel (%p132) target = $region28
      $region27: #{tpu_custom_call.1} parent=5 // pred_region
        %s136 = ssub.s32 %s15, 1
        %s137 = sand.u32 %s49, 1
        %s138 = scalar_lea.sflag [#allocation4], %s137
        %s139 = sand.u32 %s49, 1
        %s140 = smul.addr %s139, 16
        %s141 = scalar_lea.vmem [#allocation3], %s140
        // Predicated region
        $region29: #{tpu_custom_call.1} parent=27 // pred_check
          %p142 = pneg %p62
        $region30: #{tpu_custom_call.1} parent=27 // pred_check_branch
          %144 = sbr.rel (%p142) target = $region32
        $region31: #{tpu_custom_call.1} parent=27 // pred_region
          %146 = dma.done %s138, 256
        $region32: #{tpu_custom_call.1} parent=27 // pred_fallthru
          _
        %p147 = pneg %p36
        %p148 = pneg %p33
        %s149 = sand.u32 %s49, 1
        %s150 = scalar_lea.sflag [#allocation4], %s149
        %s151 = sand.u32 %s49, 1
        %s152 = smul.addr %s151, 16
        %s153 = scalar_lea.vmem [#allocation3], %s152
        %p154 = pneg %p62
        %p155 = pneg %p59
        %p156 = pneg %p88
        %p157 = pneg %p85
        %s158 = sand.u32 %s75, 1
        %s159 = scalar_lea.sflag [#allocation5], %s158
        %s160 = sand.u32 %s75, 1
        %s161 = smul.addr %s160, 16
        %s162 = scalar_lea.vmem [#allocation6], %s161
        %v164 = vld [vmem:[%s141] sm:$0xff]
        %v165 = vld [vmem:[%s141 + $0x8] sm:$0xff]
        %v166 = vpack.c.bf16 %v165, %v164
        %v168 = vunpack.c.l.b16 %v166
        %v169 = vunpack.c.h.b16 %v166
        %v170 = vpack.c.b16 %v168, %v168
        %v171 = vpack.c.b16 %v169, %v169
        %174 = vmatpush.bf16.xpose.msra.mxu0 0
        %175 = vmatpush.bf16.xpose.msra.mxu0 0
        %176 = vmatpush.bf16.xpose.msra.mxu0 0
        %177 = vmatpush.bf16.xpose.msra.mxu0 0
        %178 = vmatpush.bf16.xpose.msra.mxu0 0
        %179 = vmatpush.bf16.xpose.msra.mxu0 0
        %180 = vmatpush.bf16.xpose.msra.mxu0 0
        %181 = vmatpush.bf16.xpose.msra.mxu0 %v170
        %182 = vmatmul.bf16.gmra.mxu0 %v170
        %v183 = vpop.f32.mrf.mxu0
        %v184 = vadd.f32 0.0, %v183
        %v185 = vpop.f32.mrf.mxu0
        %186 = vdwg.mxu0
        %187 = vmatpush.bf16.xpose.msra.mxu0 0
        %188 = vmatpush.bf16.xpose.msra.mxu0 0
        %189 = vmatpush.bf16.xpose.msra.mxu0 0
        %190 = vmatpush.bf16.xpose.msra.mxu0 0
        %191 = vmatpush.bf16.xpose.msra.mxu0 0
        %192 = vmatpush.bf16.xpose.msra.mxu0 0
        %193 = vmatpush.bf16.xpose.msra.mxu0 0
        %194 = vmatpush.bf16.xpose.msra.mxu0 %v171
        %195 = vmatmul.bf16.gmra.mxu0 %v171
        %v196 = vpop.f32.mrf.mxu0
        %v197 = vadd.f32 %v184, %v196
        %v198 = vpop.f32.mrf.mxu0
        %199 = vdwg.mxu0
        %vm200 = vcmask 64512
        %v201 = vsel %vm200, %v197, inf
        %202 = vmin.xlane.f32.xlu0 %v201
        %v203 = vpop.xlane.xlu0 %202
        %v204 = vsub.f32 %v203, %v197
        %v205 = vmul.f32 %v204, 1.442695
        %v206 = vpow.pop %v205
        %v207 = vsel %vm200, %v206, 0.0
        %208 = vadd.xlane.f32.xlu0 %v207
        %v209 = vpop.xlane.xlu0 %208
        %v210 = vrcp.pop %v209
        %s211 = sld [smem:[#allocation2]]
        %v212 = vmul.f32 %v206, %v210
        %v213 = vpack.c.bf16 %v212, %v212
        %v215 = vsel %vm200, %v213, 0
        %vm217 = vcmask 1043456
        %v219 = vsel %vm217, %v170, 0
        %v222 = vsel %vm217, %v171, 0
        %224 = vmatpush.bf16.msra.mxu0 0
        %225 = vmatpush.bf16.msra.mxu0 0
        %226 = vmatpush.bf16.msra.mxu0 0
        %227 = vmatpush.bf16.msra.mxu0 0
        %228 = vmatpush.bf16.msra.mxu0 0
        %229 = vmatpush.bf16.msra.mxu0 0
        %230 = vmatpush.bf16.msra.mxu0 0
        %231 = vmatpush.bf16.msra.mxu0 %v219
        %232 = vmatmul.bf16.gmra.mxu0 %v215
        %v233 = vpop.f32.mrf.mxu0
        %v234 = vadd.f32 0.0, %v233
        %v235 = vpop.f32.mrf.mxu0
        %236 = vdwg.mxu0
        %237 = vmatpush.bf16.msra.mxu0 0
        %238 = vmatpush.bf16.msra.mxu0 0
        %239 = vmatpush.bf16.msra.mxu0 0
        %240 = vmatpush.bf16.msra.mxu0 0
        %241 = vmatpush.bf16.msra.mxu0 0
        %242 = vmatpush.bf16.msra.mxu0 0
        %243 = vmatpush.bf16.msra.mxu0 0
        %244 = vmatpush.bf16.msra.mxu0 %v222
        %245 = vmatmul.bf16.gmra.mxu0 %v215
        %v246 = vpop.f32.mrf.mxu0
        %v247 = vadd.f32 0.0, %v246
        %v248 = vpop.f32.mrf.mxu0
        %249 = vdwg.mxu0
        %v250 = vstv %s211
        %v251 = vmul.f32 %v250, %v234
        %v252 = vmul.f32 %v250, %v247
        %v253 = vadd.f32 %v251, %v164
        %v254 = vadd.f32 %v252, %v165
        %255 = vst [vmem:[%s162] sm:$0xff] %v253
        %256 = vst [vmem:[%s162 + $0x8] sm:$0xff] %v254
        %s257 = sand.u32 %s75, 1
        %s258 = scalar_lea.sflag [#allocation5], %s257
        %s259 = sand.u32 %s75, 1
        %s260 = smul.addr %s259, 16
        %s261 = scalar_lea.vmem [#allocation6], %s260
        // Predicated region
        $region33: #{tpu_custom_call.1} parent=27 // pred_check
          %p262 = pneg %p85
        $region34: #{tpu_custom_call.1} parent=27 // pred_check_branch
          %264 = sbr.rel (%p262) target = $region36
        $region35: #{tpu_custom_call.1} parent=27 // pred_region
          %266 = vsyncadd %s258, 0
          %s267 = smul.addr %s20, 2
          %s268 = smul.addr %s267, 8
          %s269 = scalar_lea.hbm %s2, %s268
          %s271 = sshll.u32 %s261, 4
          %s272 = int_to_ptr.vmem [resolvable:$true] %s271
          %s273 = sshll.u32 %s269, 4
          %s274 = int_to_ptr.hbm [resolvable:$true] %s273
          %276 = dma.vmem_to_hbm [thread:$0]  %s272, 256, %s274, %s258
        $region36: #{tpu_custom_call.1} parent=27 // pred_fallthru
          _
      $region28: #{tpu_custom_call.1} parent=5 // pred_fallthru
        _
      %p277 = scmp.le.s32.totalorder 2, %s15
      // Predicated region
      $region37: #{tpu_custom_call.1} parent=5 // pred_check
        %p278 = pneg %p277
      $region38: #{tpu_custom_call.1} parent=5 // pred_check_branch
        %280 = sbr.rel (%p278) target = $region40
      $region39: #{tpu_custom_call.1} parent=5 // pred_region
        %s281 = ssub.s32 %s15, 2
        // Predicated region
        $region41: #{tpu_custom_call.1} parent=39 // pred_check
          %p282 = pneg %p91
        $region42: #{tpu_custom_call.1} parent=39 // pred_check_branch
          %284 = sbr.rel (%p282) target = $region44
        $region43: #{tpu_custom_call.1} parent=39 // pred_region
          %s285 = sand.u32 %s76, 1
          %s286 = scalar_lea.sflag [#allocation5], %s285
          %s287 = sand.u32 %s76, 1
          %s288 = smul.addr %s287, 16
          %s289 = scalar_lea.vmem [#allocation6], %s288
          %291 = dma.done %s286, 256
        $region44: #{tpu_custom_call.1} parent=39 // pred_fallthru
          _
      $region40: #{tpu_custom_call.1} parent=5 // pred_fallthru
        _
    $region6: #{tpu_custom_call.1} parent=1 // loop_footer
      %s19 = sadd.s32 1, %s15
    $region7: #{tpu_custom_call.1} parent=1 // loop_footer_branch
      %14 = sbr.rel target = $region3
    $region8: #{tpu_custom_call.1} parent=1 // loop_exit
      _
    %292 = vsyncpa [#allocation4], 1
    %s293 = scalar_lea.sflag [#allocation4], 1
    %294 = vsyncpa %s293, 1
    %295 = vsyncpa [#allocation5], 1
    %s296 = scalar_lea.sflag [#allocation5], 1
    %297 = vsyncpa %s296, 1

</llo_original>
